<compile_context>
chip_gen: v6e
topology: v6e:2x2x1
jax: 0.10.0
libtpu: 0.0.40
codegen_flags: <defaults>
</compile_context>

<pallas_src>
import functools
import math

import jax
import jax.numpy as jnp
from jax import lax
from jax.experimental import pallas as pl
from jax.experimental.pallas import tpu as pltpu


# ----------------------------------------------------------------------------
# Kernel 1: row-tiled matmul (in_proj), bf16 operands, f32 accumulation
# ----------------------------------------------------------------------------
def matmul_kernel(x_ref, w_ref, o_ref):
    o_ref[...] = jnp.dot(x_ref[...].astype(jnp.bfloat16), w_ref[...],
                         preferred_element_type=jnp.float32)


def pallas_matmul(x, w_bf16, block_m=256):
    m, k = x.shape
    _, n = w_bf16.shape
    bm = min(block_m, m)
    return pl.pallas_call(
        matmul_kernel,
        out_shape=jax.ShapeDtypeStruct((m, n), jnp.float32),
        grid=(pl.cdiv(m, bm),),
        in_specs=[pl.BlockSpec((bm, k), lambda i: (i, 0)),
                  pl.BlockSpec((k, n), lambda i: (0, 0))],
        out_specs=pl.BlockSpec((bm, n), lambda i: (i, 0)),
        compiler_params=pltpu.CompilerParams(dimension_semantics=("parallel",)),
    )(x, w_bf16)


# ----------------------------------------------------------------------------
# Kernel 2: depthwise 7x7 conv (groups == channels) + bias + SiLU, NHWC layout.
#   * halo handled in a VMEM scratch inside the kernel (no HBM pad round trip)
#   * grid tiled over (batch, lane-aligned E tiles)
# ----------------------------------------------------------------------------
def dwconv_silu_kernel(x_ref, wconv_ref, bconv_ref, out_ref, xpad_ref):
    _, h, w, et = x_ref.shape
    kk = wconv_ref.shape[0]
    k = int(round(math.sqrt(kk)))
    p = k // 2
    # In-kernel halo: zero the padded scratch, drop the tile interior into it.
    xpad_ref[...] = jnp.zeros_like(xpad_ref)
    xpad_ref[:, p:p + h, p:p + w, :] = x_ref[...]
    acc = jnp.zeros((1, h, w, et), jnp.float32) + bconv_ref[...][None, None]
    for kh in range(k):
        for kw in range(k):
            idx = kh * k + kw
            tap = wconv_ref[idx:idx + 1, :][None, None]            # (1,1,1,Et)
            acc = acc + tap * xpad_ref[:, kh:kh + h, kw:kw + w, :]
    out_ref[...] = acc * jax.nn.sigmoid(acc)                       # SiLU


def pallas_dwconv_silu(x_hw, wconv49, bconv):
    bsz, h, w, e = x_hw.shape
    kk = wconv49.shape[0]
    kc = int(round(math.sqrt(kk)))
    pad = kc // 2
    e_tile = e
    for cand in (256, 128):
        if e % cand == 0:
            e_tile = cand
            break
    return pl.pallas_call(
        dwconv_silu_kernel,
        out_shape=jax.ShapeDtypeStruct((bsz, h, w, e), jnp.float32),
        grid=(bsz, e // e_tile),
        in_specs=[pl.BlockSpec((1, h, w, e_tile), lambda b, c: (b, 0, 0, c)),
                  pl.BlockSpec((kk, e_tile), lambda b, c: (0, c)),
                  pl.BlockSpec((1, e_tile), lambda b, c: (0, c))],
        out_specs=pl.BlockSpec((1, h, w, e_tile), lambda b, c: (b, 0, 0, c)),
        scratch_shapes=[pltpu.VMEM((1, h + 2 * pad, w + 2 * pad, e_tile), jnp.float32)],
        compiler_params=pltpu.CompilerParams(dimension_semantics=("parallel", "parallel")),
    )(x_hw, wconv49, bconv)


# ----------------------------------------------------------------------------
# Kernel 3: fused x_proj + dt_proj + softplus + selective scan + D skip.
#   grid = (batch "parallel", L-chunks "arbitrary"); SSM state (N, E) carried in VMEM.
#   Chunk-level bf16 GEMMs on the MXU; per-token recurrence runs over 8-token sub-blocks
#   so da/dBu intermediates never exceed (sub_block, N, E).
# ----------------------------------------------------------------------------
def ssm_scan_kernel(xc_ref, wxproj_ref, wdt_ref, bdt2_ref, aneg_ref, dvec_ref,
                    y_ref, h_ref, delta_scr, b_scr, c_scr, *, sub_block):
    lc, e = xc_ref.shape
    n = aneg_ref.shape[0]
    r = wdt_ref.shape[0]

    # Reset the carried SSM state at the start of each batch entry's scan.
    @pl.when(pl.program_id(1) == 0)
    def _():
        h_ref[...] = jnp.zeros_like(h_ref)

    xc = xc_ref[...]                                             # (Lc, E) f32
    a_neg = aneg_ref[...]                                        # (N, E)  = -exp(A_log).T
    dvec = dvec_ref[...]                                         # (1, E)

    # ---- chunk-level GEMMs (MXU, bf16 operands, f32 accumulation) ----
    xproj = jnp.dot(xc.astype(jnp.bfloat16), wxproj_ref[...],
                    preferred_element_type=jnp.float32)          # (Lc, P) = [dt | B | C | pad]
    # dt_proj bias applied + delta_bias added again before softplus (faithful to reference).
    pre = jnp.dot(xproj[:, :r].astype(jnp.bfloat16), wdt_ref[...],
                  preferred_element_type=jnp.float32) + bdt2_ref[...]
    delta_scr[...] = jnp.where(pre > 20.0, pre,
                               jnp.log1p(jnp.exp(jnp.minimum(pre, 20.0))))     # softplus
    b_scr[...] = xproj[:, r:r + n]
    c_scr[...] = xproj[:, r + n:r + 2 * n]

    # ---- sequential recurrence, sub-blocked so da / dBu stay (sb, N, E)-sized ----
    def sub_body(s, carry):
        off = pl.multiple_of(s * sub_block, sub_block)
        d_sb = delta_scr[pl.ds(off, sub_block), :]               # (sb, E)
        u_sb = xc_ref[pl.ds(off, sub_block), :]                  # (sb, E)
        b_sb = b_scr[pl.ds(off, sub_block), :]                   # (sb, N)
        c_sb = c_scr[pl.ds(off, sub_block), :]                   # (sb, N)
        da = jnp.exp(d_sb[:, None, :] * a_neg[None, :, :])       # (sb, N, E)
        dbu = (d_sb * u_sb)[:, None, :] * b_sb[:, :, None]       # (sb, N, E)
        h = h_ref[...]                                           # (N, E)
        hs = []
        for t in range(sub_block):                               # small static unroll
            h = h * da[t] + dbu[t]
            hs.append(h)
        h_ref[...] = h
        h_stack = jnp.stack(hs, axis=0)                          # (sb, N, E)
        y_blk = jnp.sum(h_stack * c_sb[:, :, None], axis=1) + u_sb * dvec     # (sb, E)
        y_ref[pl.ds(off, sub_block), :] = y_blk
        return carry

    lax.fori_loop(0, lc // sub_block, sub_body, 0)


def pallas_ssm_scan(x_conv, wxproj_bf16, wdt_bf16, bdt2, aneg, dvec, l_chunk,
                    sub_block=8, vmem_limit_bytes=48 * 1024 * 1024):
    bsz, l_pad, e = x_conv.shape
    n = aneg.shape[0]
    assert l_pad % l_chunk == 0 and l_chunk % sub_block == 0

    chunk_map = lambda b, i: (b, i, 0)
    full2 = lambda b, i: (0, 0)
    kernel = functools.partial(ssm_scan_kernel, sub_block=sub_block)
    return pl.pallas_call(
        kernel,
        out_shape=jax.ShapeDtypeStruct((bsz, l_pad, e), jnp.float32),
        grid=(bsz, l_pad // l_chunk),
        in_specs=[
            pl.BlockSpec((None, l_chunk, e), chunk_map),   # x_conv chunk (batch dim squeezed)
            pl.BlockSpec(wxproj_bf16.shape, full2),        # fused, 128-padded x_proj weight
            pl.BlockSpec(wdt_bf16.shape, full2),           # dt_proj weight
            pl.BlockSpec(bdt2.shape, full2),               # 2 * dt_proj bias
            pl.BlockSpec(aneg.shape, full2),               # -exp(A_log).T  (N, E)
            pl.BlockSpec(dvec.shape, full2),               # D
        ],
        out_specs=pl.BlockSpec((None, l_chunk, e), chunk_map),
        scratch_shapes=[pltpu.VMEM((n, e), jnp.float32),          # carried SSM state h
                        pltpu.VMEM((l_chunk, e), jnp.float32),    # delta (softplus'd)
                        pltpu.VMEM((l_chunk, n), jnp.float32),    # B
                        pltpu.VMEM((l_chunk, n), jnp.float32)],   # C
        compiler_params=pltpu.CompilerParams(
            dimension_semantics=("parallel", "arbitrary"),
            vmem_limit_bytes=vmem_limit_bytes),
    )(x_conv, wxproj_bf16, wdt_bf16, bdt2, aneg, dvec)


# ----------------------------------------------------------------------------
# Kernel 4: cross-batch sum of y (faithful to `sum(ys)` over dim 0) + SiLU(z) gating +
#           out_proj (bf16 MXU), tiled over L (parallel).
# ----------------------------------------------------------------------------
def gate_out_kernel(y_ref, z_ref, wout_ref, o_ref):
    bsz, lt, e = z_ref.shape
    dm = o_ref.shape[2]
    y_sum = jnp.sum(y_ref[...], axis=0, keepdims=True)               # (1, Lt, E)
    gated = y_sum * (z_ref[...] * jax.nn.sigmoid(z_ref[...]))        # (B, Lt, E)
    out = jnp.dot(gated.reshape(bsz * lt, e).astype(jnp.bfloat16), wout_ref[...],
                  preferred_element_type=jnp.float32)                # (B*Lt, d_model)
    o_ref[...] = out.reshape(bsz, lt, dm)


def pallas_gate_out(y, z, wout_bf16, l_tile):
    bsz, l_pad, e = y.shape
    dm = wout_bf16.shape[1]
    cmap = lambda i: (0, i, 0)
    return pl.pallas_call(
        gate_out_kernel,
        out_shape=jax.ShapeDtypeStruct((bsz, l_pad, dm), jnp.float32),
        grid=(l_pad // l_tile,),
        in_specs=[pl.BlockSpec((bsz, l_tile, e), cmap),
                  pl.BlockSpec((bsz, l_tile, e), cmap),
                  pl.BlockSpec(wout_bf16.shape, lambda i: (0, 0))],
        out_specs=pl.BlockSpec((bsz, l_tile, dm), cmap),
        compiler_params=pltpu.CompilerParams(dimension_semantics=("parallel",)),
    )(y, z, wout_bf16)


# ----------------------------------------------------------------------------
# Parameter construction (deterministic, mirrors the PyTorch __init__ shapes)
# ----------------------------------------------------------------------------
def init_params(key, d_model, d_state=16, expand=2, conv_size=7,
                dt_min=0.001, dt_max=0.1, dt_scale=1.0, dt_init_floor=1e-4):
    e = int(expand * d_model)
    r = math.ceil(d_model / 16)
    n = d_state
    ks = jax.random.split(key, 8)

    def unif(k, shape, scale):
        return jax.random.uniform(k, shape, jnp.float32, -scale, scale)

    win = unif(ks[0], (d_model, 2 * e), 1.0 / math.sqrt(d_model))            # in_proj.weight.T
    wconv_full = unif(ks[1], (e, conv_size, conv_size), 1.0 / math.sqrt(conv_size * conv_size))
    wconv49 = wconv_full.reshape(e, conv_size * conv_size).T                 # (k*k, E)
    bconv = unif(ks[2], (1, e), 1.0 / math.sqrt(conv_size * conv_size))
    wx_t = unif(ks[3], (e, r + 2 * n), 1.0 / math.sqrt(e))                   # x_proj.weight.T
    wxdt, wxb, wxc = wx_t[:, :r], wx_t[:, r:r + n], wx_t[:, r + n:]
    dt_init_std = (r ** -0.5) * dt_scale
    wdt = unif(ks[4], (r, e), dt_init_std)                                   # dt_proj.weight.T
    dt = jnp.exp(jax.random.uniform(ks[5], (e,)) * (math.log(dt_max) - math.log(dt_min))
                 + math.log(dt_min))
    dt = jnp.maximum(dt, dt_init_floor)
    inv_dt = dt + jnp.log(-jnp.expm1(-dt))
    bdt = inv_dt.reshape(1, e).astype(jnp.float32)
    a_log = jnp.log(jnp.broadcast_to(jnp.arange(1, n + 1, dtype=jnp.float32)[None, :], (e, n)))
    dvec = jnp.ones((1, e), jnp.float32)
    wout = unif(ks[6], (e, d_model), 1.0 / math.sqrt(e))                     # out_proj.weight.T

    return dict(Win=win, wconv49=wconv49, bconv=bconv, Wxdt=wxdt, WxB=wxb, WxC=wxc,
                Wdt=wdt, bdt=bdt, A_log=a_log, Dvec=dvec, Wout=wout)


def prepare_params(p):
    """One-time weight prep: bf16 casts, fused + 128-padded x_proj, hoisted -exp(A_log)."""
    r = p['Wxdt'].shape[1]
    n = p['WxB'].shape[1]
    wxproj = jnp.concatenate([p['Wxdt'], p['WxB'], p['WxC']], axis=1)        # (E, r+2N)
    p_out = ((r + 2 * n + 127) // 128) * 128
    if p_out != r + 2 * n:
        wxproj = jnp.pad(wxproj, ((0, 0), (0, p_out - (r + 2 * n))))
    return dict(
        Win_bf16=p['Win'].astype(jnp.bfloat16),
        wconv49=p['wconv49'], bconv=p['bconv'],
        Wxproj_bf16=wxproj.astype(jnp.bfloat16),
        Wdt_bf16=p['Wdt'].astype(jnp.bfloat16),
        bdt2=(p['bdt'] + p['bdt']).astype(jnp.float32),       # bias applied twice (faithful)
        Aneg=(-jnp.exp(jnp.transpose(p['A_log']))).astype(jnp.float32),      # (N, E)
        Dvec=p['Dvec'],
        Wout_bf16=p['Wout'].astype(jnp.bfloat16),
    )


def _choose_l_chunk(l_total, max_chunk=128):
    """Largest multiple-of-8 chunk (<= max_chunk) minimizing tail padding."""
    best_c, best_pad = 8, None
    upper = min(max_chunk, ((l_total + 7) // 8) * 8)
    for c in range(8, upper + 1, 8):
        padamt = ((l_total + c - 1) // c) * c - l_total
        if best_pad is None or padamt < best_pad or (padamt == best_pad and c > best_c):
            best_c, best_pad = c, padamt
    return best_c


# ----------------------------------------------------------------------------
# Forward pass (wrapper glue: reshapes / tail padding / slicing only)
# ----------------------------------------------------------------------------
def ssm_forward(x, hw_shape, kp, l_chunk=None, sub_block=8):
    bsz, l_total, dm = x.shape
    h, w = hw_shape
    e = kp['Dvec'].shape[1]

    # in_proj -> chunk into (x, z)
    xz = pallas_matmul(x.reshape(bsz * l_total, dm), kp['Win_bf16'])
    xz = xz.reshape(bsz, l_total, 2 * e)
    x_part, z_part = xz[..., :e], xz[..., e:]

    # depthwise 7x7 conv + SiLU on the (H, W) grid (halo handled inside the kernel)
    x_hw = x_part.reshape(bsz, h, w, e)
    x_conv = pallas_dwconv_silu(x_hw, kp['wconv49'], kp['bconv']).reshape(bsz, l_total, e)

    # L-chunking; pad the tail up to a chunk multiple (causal-safe), sliced off at the end
    if l_chunk is None:
        l_chunk = _choose_l_chunk(l_total)
    l_pad = ((l_total + l_chunk - 1) // l_chunk) * l_chunk
    if l_pad != l_total:
        pad_cfg = ((0, 0), (0, l_pad - l_total), (0, 0))
        x_conv = jnp.pad(x_conv, pad_cfg)
        z_part = jnp.pad(z_part, pad_cfg)

    # fused x_proj + dt_proj + softplus + selective scan + D skip  ->  y (B, L_pad, E)
    y = pallas_ssm_scan(x_conv, kp['Wxproj_bf16'], kp['Wdt_bf16'], kp['bdt2'],
                        kp['Aneg'], kp['Dvec'], l_chunk, sub_block=sub_block)

    # cross-batch sum + SiLU(z) gating + out_proj
    out = pallas_gate_out(y, z_part, kp['Wout_bf16'], l_chunk)
    return out[:, :l_total, :]


# ----------------------------------------------------------------------------
# Pure-JAX reference (mirrors the PyTorch forward, all f32)
# ----------------------------------------------------------------------------
def ssm_reference(x, p, h, w):
    bsz, l_total, dm = x.shape
    e = p['Dvec'].shape[1]
    n = p['A_log'].shape[1]
    kc = int(round(math.sqrt(p['wconv49'].shape[0])))
    pad = kc // 2

    xz = (x.reshape(bsz * l_total, dm) @ p['Win']).reshape(bsz, l_total, 2 * e)
    x_part, z_part = xz[..., :e], xz[..., e:]
    x_hw = x_part.reshape(bsz, h, w, e)
    xpad = jnp.pad(x_hw, ((0, 0), (pad, pad), (pad, pad), (0, 0)))
    acc = jnp.zeros((bsz, h, w, e), jnp.float32) + p['bconv'].reshape(1, 1, 1, e)
    for kh in range(kc):
        for kw in range(kc):
            acc = acc + p['wconv49'][kh * kc + kw].reshape(1, 1, 1, e) * \
                xpad[:, kh:kh + h, kw:kw + w, :]
    x_conv = (acc * jax.nn.sigmoid(acc)).reshape(bsz, l_total, e)

    dt_small = x_conv @ p['Wxdt']
    bm = x_conv @ p['WxB']
    cm = x_conv @ p['WxC']
    pre = dt_small @ p['Wdt'] + p['bdt'] + p['bdt']                 # bias applied twice (faithful)
    delta = jnp.where(pre > 20.0, pre, jnp.log1p(jnp.exp(jnp.minimum(pre, 20.0))))
    a_mat = -jnp.exp(p['A_log'])                                    # (E, N)

    hstate = jnp.zeros((bsz, e, n), jnp.float32)
    ys = []
    for l in range(l_total):
        dl = delta[:, l, :]
        ul = x_conv[:, l, :]
        da = jnp.exp(dl[:, :, None] * a_mat[None])
        dbu = (dl * ul)[:, :, None] * bm[:, l, None, :]
        hstate = hstate * da + dbu
        y_l = jnp.sum(hstate * cm[:, l, None, :], axis=-1) + ul * p['Dvec']
        ys.append(y_l)
    y = jnp.stack(ys, axis=1)                                       # (B, L, E)
    y_sum = jnp.sum(y, axis=0)                                      # builtin sum over batch
    gated = y_sum[None] * (z_part * jax.nn.sigmoid(z_part))
    return gated @ p['Wout']


if __name__ == "__main__":
    d_model = 32
    batch, height, width = 2, 8, 8
    seq_len = height * width

    key = jax.random.PRNGKey(0)
    k_param, k_x = jax.random.split(key)
    params = init_params(k_param, d_model)
    kparams = prepare_params(params)
    x = jax.random.normal(k_x, (batch, seq_len, d_model), jnp.float32)

    # l_chunk=16, sub_block=8 -> 4 sequential L-chunks per batch entry (carried (N, E) state)
    # and 2 recurrence sub-blocks per chunk; batch axis is the parallel grid dim.
    out = jax.block_until_ready(ssm_forward(x, (height, width), kparams,
                                            l_chunk=16, sub_block=8))
    assert out.shape == (batch, seq_len, d_model)

    ref = jax.block_until_ready(ssm_reference(x, params, height, width))

    err = float(jnp.max(jnp.abs(out - ref)))
    scale = float(jnp.max(jnp.abs(ref))) + 1e-6
    # bf16 MXU operands (f32 accumulation) vs the all-f32 reference.
    tol = 2e-2 * scale + 2e-3
    assert err <= tol, f"kernel/reference mismatch: max_err={err}, scale={scale}, tol={tol}"

    print("KERNEL_OK")
</pallas_src>

<mosaic_0001>
module attributes {stable_mosaic.version = 11 : i64} {
  func.func @matmul_kernel(%arg0: i32, %arg1: memref<128x32xf32, #tpu.memory_space<vmem>>, %arg2: memref<32x128xbf16, #tpu.memory_space<vmem>>, %arg3: memref<128x128xf32, #tpu.memory_space<vmem>>) attributes {dimension_semantics = [#tpu.dimension_semantics<parallel>], iteration_bounds = array<i64: 1>, scalar_prefetch = 0 : i64, scratch_operands = 0 : i64, tpu.core_type = #tpu.core_type<tc>, window_params = [{transform_indices = @transform_0, window_bounds = array<i64: 128, 32>}, {pipeline_mode = #tpu.pipeline_mode<synchronous>, transform_indices = @transform_1, window_bounds = array<i64: 32, 128>}, {transform_indices = @transform_2, window_bounds = array<i64: 128, 128>}]} {
    %c0 = arith.constant 0 : index
    %c0_0 = arith.constant 0 : index
    %0 = vector.load %arg1[%c0, %c0_0] : memref<128x32xf32, #tpu.memory_space<vmem>>, vector<128x32xf32>
    %1 = arith.truncf %0 : vector<128x32xf32> to vector<128x32xbf16>
    %c0_1 = arith.constant 0 : index
    %c0_2 = arith.constant 0 : index
    %2 = vector.load %arg2[%c0_1, %c0_2] : memref<32x128xbf16, #tpu.memory_space<vmem>>, vector<32x128xbf16>
    %cst = arith.constant dense<0.000000e+00> : vector<128x128xf32>
    %3 = tpu.matmul %1, %2, %cst {dimension_numbers = #tpu.dot_dimension_numbers<[1], [0], [0], [1], [0, 0, 1, 1], [], []>} : vector<128x32xbf16>, vector<32x128xbf16>, vector<128x128xf32> -> vector<128x128xf32>
    %c0_3 = arith.constant 0 : index
    %c0_4 = arith.constant 0 : index
    %4 = vector.load %arg3[%c0_3, %c0_4] : memref<128x128xf32, #tpu.memory_space<vmem>>, vector<128x128xf32>
    tpu.vector_store %arg3[%c0_3, %c0_4], %3 {strides = array<i32>} : memref<128x128xf32, #tpu.memory_space<vmem>>, vector<128x128xf32>,
    return
  }
  func.func @transform_0(%arg0: i32) -> (i32, i32) {
    %c0_i32 = arith.constant 0 : i32
    %c0_i32_0 = arith.constant 0 : i32
    return %arg0, %c0_i32 : i32, i32
  }
  func.func @transform_1(%arg0: i32) -> (i32, i32) {
    %c0_i32 = arith.constant 0 : i32
    %c0_i32_0 = arith.constant 0 : i32
    %c0_i32_1 = arith.constant 0 : i32
    return %c0_i32, %c0_i32_0 : i32, i32
  }
  func.func @transform_2(%arg0: i32) -> (i32, i32) {
    %c0_i32 = arith.constant 0 : i32
    %c0_i32_0 = arith.constant 0 : i32
    return %arg0, %c0_i32 : i32, i32
  }
}

</mosaic_0001>

<llo_original>
// kernel: tpu_custom_call.1
$region0: #{tpu_custom_call.1}
  #allocation0 [shape = 'u32[]', space=smem, size = 0x4, offset = 0x4, fixed_abs, tag = 'smem constant byte address 0x4 - core index']
  #allocation1 [shape = 'u32[144,128]{1,0:T(1,128)}', space=vmem, size = 0x12000, scoped, tag = 'internal scratch']
  %s0 = inlined_call_operand.vmem [shape: f32[128,32], index: 0, kind: input, shape index: {}]
  %s1 = inlined_call_operand.vmem [shape: bf16[32,128], index: 1, kind: input, shape index: {}]
  %s2 = inlined_call_operand.hbm [shape: f32[128,128], index: 2, kind: output, shape index: {}]
  %s3 = sld [smem:[#allocation0]]
  $region18: #{tpu_custom_call.1} parent=0
    _
  %s5 = ssub.s32 1, %s3
  %s6 = scalar_select 0, %s5, %s3
  $region1: #{tpu_custom_call.1} parent=0
    #allocation2 [shape = 'u8[65536]{0}', space=vmem, size = 0x10000, scoped, tag = 'output window, operand 0, single buffered']
    #allocation3 [shape = 's32[1]{0}', space=sflag, size = 0x4, scoped, tag = 'scoped memory for tpu_custom_call.1']
    %7 = vsyncpa [#allocation3], 0
    // Predicated region
    $region2: #{tpu_custom_call.1} parent=1 // pred_check
      _
    $region3: #{tpu_custom_call.1} parent=1 // pred_check_branch
      %9 = sbr.rel (0) target = $region5
    $region4: #{tpu_custom_call.1} parent=1 // pred_region
      _
    $region5: #{tpu_custom_call.1} parent=1 // pred_fallthru
      _
    // Predicated region
    $region6: #{tpu_custom_call.1} parent=1 // pred_check
      _
    $region7: #{tpu_custom_call.1} parent=1 // pred_check_branch
      %11 = sbr.rel (0) target = $region9
    $region8: #{tpu_custom_call.1} parent=1 // pred_region
      _
    $region9: #{tpu_custom_call.1} parent=1 // pred_fallthru
      _
    %v13 = vld [vmem:[%s0] sm:$0xff]
    %v14 = vld [vmem:[%s0 + $0x8] sm:$0xff]
    %v15 = vld [vmem:[%s0 + $0x10] sm:$0xff]
    %v16 = vld [vmem:[%s0 + $0x18] sm:$0xff]
    %v17 = vld [vmem:[%s0 + $0x20] sm:$0xff]
    %v18 = vld [vmem:[%s0 + $0x28] sm:$0xff]
    %v19 = vld [vmem:[%s0 + $0x30] sm:$0xff]
    %v20 = vld [vmem:[%s0 + $0x38] sm:$0xff]
    %v21 = vld [vmem:[%s0 + $0x40] sm:$0xff]
    %v22 = vld [vmem:[%s0 + $0x48] sm:$0xff]
    %v23 = vld [vmem:[%s0 + $0x50] sm:$0xff]
    %v24 = vld [vmem:[%s0 + $0x58] sm:$0xff]
    %v25 = vld [vmem:[%s0 + $0x60] sm:$0xff]
    %v26 = vld [vmem:[%s0 + $0x68] sm:$0xff]
    %v27 = vld [vmem:[%s0 + $0x70] sm:$0xff]
    %v28 = vld [vmem:[%s0 + $0x78] sm:$0xff]
    %v29 = vpack.c.bf16 %v14, %v13
    %v30 = vpack.c.bf16 %v16, %v15
    %v31 = vpack.c.bf16 %v18, %v17
    %v32 = vpack.c.bf16 %v20, %v19
    %v33 = vpack.c.bf16 %v22, %v21
    %v34 = vpack.c.bf16 %v24, %v23
    %v35 = vpack.c.bf16 %v26, %v25
    %v36 = vpack.c.bf16 %v28, %v27
    %v37 = vld [vmem:[%s1] sm:$0xf]
    %v38 = vld [vmem:[%s1 + $0x4] sm:$0xf]
    %v39 = vld [vmem:[%s1 + $0x8] sm:$0xf]
    %v40 = vld [vmem:[%s1 + $0xc] sm:$0xf]
    %v45 = vunpack.c.l.b16 %v37
    %v46 = vunpack.c.l.b16 %v38
    %v47 = vunpack.c.l.b16 %v39
    %v48 = vunpack.c.l.b16 %v40
    %v49 = vpack.c.b16 %v46, %v45
    %v50 = vpack.c.b16 %v48, %v47
    %vm53 = vcmask 261120
    %v55 = vsel %vm53, %v29, 0
    %v58 = vsel %vm53, %v30, 0
    %v61 = vsel %vm53, %v31, 0
    %v64 = vsel %vm53, %v32, 0
    %v67 = vsel %vm53, %v33, 0
    %v70 = vsel %vm53, %v34, 0
    %v73 = vsel %vm53, %v35, 0
    %v76 = vsel %vm53, %v36, 0
    %78 = vmatprep.subr.bf16.mxu0 0
    %79 = vmatpush1.bf16.msra.mxu0 0
    %80 = vmatprep.subr.bf16.mxu0 0
    %81 = vmatpush1.bf16.msra.mxu0 0
    %82 = vmatprep.subr.bf16.mxu0 0
    %83 = vmatpush1.bf16.msra.mxu0 0
    %84 = vmatprep.subr.bf16.mxu0 0
    %85 = vmatpush1.bf16.msra.mxu0 0
    %86 = vmatprep.subr.bf16.mxu0 0
    %87 = vmatpush1.bf16.msra.mxu0 0
    %88 = vmatprep.subr.bf16.mxu0 0
    %89 = vmatpush1.bf16.msra.mxu0 0
    %90 = vmatprep.subr.bf16.mxu0 0
    %91 = vmatpush1.bf16.msra.mxu0 %v50
    %92 = vmatprep.subr.bf16.mxu0 0
    %93 = vmatpush1.bf16.msra.mxu0 %v49
    %94 = vmatprep.subr.bf16.mxu0 0
    %95 = vmatpush2.bf16.msra.mxu0 0
    %96 = vmatprep.subr.bf16.mxu0 0
    %97 = vmatpush2.bf16.msra.mxu0 0
    %98 = vmatprep.subr.bf16.mxu0 0
    %99 = vmatpush2.bf16.msra.mxu0 0
    %100 = vmatprep.subr.bf16.mxu0 0
    %101 = vmatpush2.bf16.msra.mxu0 0
    %102 = vmatprep.subr.bf16.mxu0 0
    %103 = vmatpush2.bf16.msra.mxu0 0
    %104 = vmatprep.subr.bf16.mxu0 0
    %105 = vmatpush2.bf16.msra.mxu0 0
    %106 = vmatprep.subr.bf16.mxu0 0
    %107 = vmatpush2.bf16.msra.mxu0 0
    %108 = vmatprep.subr.bf16.mxu0 0
    %109 = vmatpush2.bf16.msra.mxu0 0
    %110 = vmatprep.mubr.bf16.mxu0 0
    %111 = vmatmul.mubr.bf16.gmra.mxu0 %v55
    %v112 = vpop.f32.mrf.mxu0
    %v113 = vadd.f32 0.0, %v112
    %v114 = vpop.f32.mrf.mxu0
    %v115 = vpop.f32.mrf.mxu0
    %v116 = vadd.f32 0.0, %v115
    %v117 = vpop.f32.mrf.mxu0
    %118 = vmatprep.mubr.bf16.mxu0 0
    %119 = vmatmul.mubr.bf16.gmra.mxu0 %v58
    %v120 = vpop.f32.mrf.mxu0
    %v121 = vadd.f32 0.0, %v120
    %v122 = vpop.f32.mrf.mxu0
    %v123 = vpop.f32.mrf.mxu0
    %v124 = vadd.f32 0.0, %v123
    %v125 = vpop.f32.mrf.mxu0
    %126 = vmatprep.mubr.bf16.mxu0 0
    %127 = vmatmul.mubr.bf16.gmra.mxu0 %v61
    %v128 = vpop.f32.mrf.mxu0
    %v129 = vadd.f32 0.0, %v128
    %v130 = vpop.f32.mrf.mxu0
    %v131 = vpop.f32.mrf.mxu0
    %v132 = vadd.f32 0.0, %v131
    %v133 = vpop.f32.mrf.mxu0
    %134 = vmatprep.mubr.bf16.mxu0 0
    %135 = vmatmul.mubr.bf16.gmra.mxu0 %v64
    %v136 = vpop.f32.mrf.mxu0
    %v137 = vadd.f32 0.0, %v136
    %v138 = vpop.f32.mrf.mxu0
    %v139 = vpop.f32.mrf.mxu0
    %v140 = vadd.f32 0.0, %v139
    %v141 = vpop.f32.mrf.mxu0
    %142 = vmatprep.mubr.bf16.mxu0 0
    %143 = vmatmul.mubr.bf16.gmra.mxu0 %v67
    %v144 = vpop.f32.mrf.mxu0
    %v145 = vadd.f32 0.0, %v144
    %v146 = vpop.f32.mrf.mxu0
    %v147 = vpop.f32.mrf.mxu0
    %v148 = vadd.f32 0.0, %v147
    %v149 = vpop.f32.mrf.mxu0
    %150 = vmatprep.mubr.bf16.mxu0 0
    %151 = vmatmul.mubr.bf16.gmra.mxu0 %v70
    %v152 = vpop.f32.mrf.mxu0
    %v153 = vadd.f32 0.0, %v152
    %v154 = vpop.f32.mrf.mxu0
    %v155 = vpop.f32.mrf.mxu0
    %v156 = vadd.f32 0.0, %v155
    %v157 = vpop.f32.mrf.mxu0
    %158 = vmatprep.mubr.bf16.mxu0 0
    %159 = vmatmul.mubr.bf16.gmra.mxu0 %v73
    %v160 = vpop.f32.mrf.mxu0
    %v161 = vadd.f32 0.0, %v160
    %v162 = vpop.f32.mrf.mxu0
    %v163 = vpop.f32.mrf.mxu0
    %v164 = vadd.f32 0.0, %v163
    %v165 = vpop.f32.mrf.mxu0
    %166 = vmatprep.mubr.bf16.mxu0 0
    %167 = vmatmul.mubr.bf16.gmra.mxu0 %v76
    %v168 = vpop.f32.mrf.mxu0
    %v169 = vadd.f32 0.0, %v168
    %v170 = vpop.f32.mrf.mxu0
    %v171 = vpop.f32.mrf.mxu0
    %v172 = vadd.f32 0.0, %v171
    %v173 = vpop.f32.mrf.mxu0
    %174 = vdwg.mxu0
    %175 = vst [vmem:[#allocation2] sm:$0xff] %v113
    %176 = vst [vmem:[#allocation2 + $0x8] sm:$0xff] %v116
    %177 = vst [vmem:[#allocation2 + $0x10] sm:$0xff] %v121
    %178 = vst [vmem:[#allocation2 + $0x18] sm:$0xff] %v124
    %179 = vst [vmem:[#allocation2 + $0x20] sm:$0xff] %v129
    %180 = vst [vmem:[#allocation2 + $0x28] sm:$0xff] %v132
    %181 = vst [vmem:[#allocation2 + $0x30] sm:$0xff] %v137
    %182 = vst [vmem:[#allocation2 + $0x38] sm:$0xff] %v140
    %183 = vst [vmem:[#allocation2 + $0x40] sm:$0xff] %v145
    %184 = vst [vmem:[#allocation2 + $0x48] sm:$0xff] %v148
    %185 = vst [vmem:[#allocation2 + $0x50] sm:$0xff] %v153
    %186 = vst [vmem:[#allocation2 + $0x58] sm:$0xff] %v156
    %187 = vst [vmem:[#allocation2 + $0x60] sm:$0xff] %v161
    %188 = vst [vmem:[#allocation2 + $0x68] sm:$0xff] %v164
    %189 = vst [vmem:[#allocation2 + $0x70] sm:$0xff] %v169
    %190 = vst [vmem:[#allocation2 + $0x78] sm:$0xff] %v172
    // Predicated region
    $region10: #{tpu_custom_call.1} parent=1 // pred_check
      _
    $region11: #{tpu_custom_call.1} parent=1 // pred_check_branch
      %192 = sbr.rel (0) target = $region13
    $region12: #{tpu_custom_call.1} parent=1 // pred_region
      %s194 = ssub.s32 2048, 2048
      %195 = vsyncadd [#allocation3], %s194
      %s196 = sshll.u32 [#allocation2], 4
      %s197 = int_to_ptr.vmem [resolvable:$true] %s196
      %202 = dma.vmem_to_hbm [thread:$0]  %s197, 2048, %s2, [#allocation3], 128, 128, 8
    $region13: #{tpu_custom_call.1} parent=1 // pred_fallthru
      _
    // Predicated region
    $region14: #{tpu_custom_call.1} parent=1 // pred_check
      _
    $region15: #{tpu_custom_call.1} parent=1 // pred_check_branch
      %204 = sbr.rel (0) target = $region17
    $region16: #{tpu_custom_call.1} parent=1 // pred_region
      %205 = dma.done [#allocation3], 2048
    $region17: #{tpu_custom_call.1} parent=1 // pred_fallthru
      _
    %206 = vsyncpa [#allocation3], 1

</llo_original>
